<compile_context>
chip_gen: v7x
topology: tpu7x:2x2x1
jax: 0.10.0
libtpu: 0.0.40
codegen_flags: <defaults>
</compile_context>

<pallas_src>
import functools

import jax
import jax.numpy as jnp
from jax import lax
from jax.experimental import pallas as pl
from jax.experimental.pallas import tpu as pltpu


def _round_up(x, m):
    return (x + m - 1) // m * m


def _vmem_budget_bytes():
    """Per-generation (table-tile cap, vmem_limit_bytes)."""
    try:
        cap = pltpu.get_tpu_info().vmem_capacity_bytes
    except Exception:
        cap = 64 * 1024 * 1024                    # conservative (v7x-sized)
    if cap >= 100 * 1024 * 1024:                  # v5e / v6e: 128 MiB VMEM
        return 6 * 1024 * 1024, 64 * 1024 * 1024
    return 2 * 1024 * 1024, 16 * 1024 * 1024      # v7x / unknown: 64 MiB VMEM


# ----------------------------------------------------------------------------
# Small-vocab path: counts @ table matmul, vocab axis tiled on the grid.
# ----------------------------------------------------------------------------
def _bag_mean_matmul_kernel(idx_ref, emb_ref, out_ref, *, bag_len):
    # idx_ref: (tb, L) int32   emb_ref: (Vt, Dp) f32   out_ref: (tb, Dp) f32
    k = pl.program_id(1)
    vt = emb_ref.shape[0]
    tb = out_ref.shape[0]

    @pl.when(k == 0)
    def _():
        out_ref[...] = jnp.zeros_like(out_ref)

    # Shift indices into this tile's local vocab range ((tb, L) work) instead
    # of adding k*Vt to a (tb, Vt) iota every grid step.
    idx_local = idx_ref[...] - k * vt                           # (tb, L)
    lane_ids = lax.broadcasted_iota(jnp.int32, (tb, vt), 1)     # grid-invariant

    if bag_len <= 8:
        # Tiny bags: static unroll with static lane slices (proven path).
        counts = jnp.zeros((tb, vt), jnp.float32)
        for l in range(bag_len):
            counts = counts + (idx_local[:, l:l + 1] == lane_ids
                               ).astype(jnp.float32)
    else:
        # Longer bags: fori_loop bounds the live set to one counts tile plus
        # one extracted column (static unroll would keep all L compares live).
        l_ids = lax.broadcasted_iota(jnp.int32, (tb, bag_len), 1)

        def body(l, counts):
            col = jnp.sum(jnp.where(l_ids == l, idx_local, 0),
                          axis=1, keepdims=True)                # (tb, 1)
            return counts + (col == lane_ids).astype(jnp.float32)

        counts = lax.fori_loop(0, bag_len, body,
                               jnp.zeros((tb, vt), jnp.float32), unroll=4)

    # Partial per-bag sum for this vocab tile via the MXU, accumulated
    # directly into the (vocab-invariant, VMEM-resident) output block.
    out_ref[...] += jnp.dot(counts, emb_ref[...],
                            preferred_element_type=jnp.float32)

    @pl.when(k == pl.num_programs(1) - 1)
    def _():
        out_ref[...] *= (1.0 / jnp.float32(bag_len))


def _bag_mean_matmul(indices, emb_p, V, D, vt, vmem_limit):
    B, L = indices.shape
    Vp, Dp = emb_p.shape

    # Balanced batch blocks; >= 2 blocks when B > 8 so both v7x cores work.
    nb = max(2 if B > 8 else 1, -(-B // 128))
    tb = _round_up(-(-B // nb), 8)
    Bp = _round_up(B, tb)

    idx_p = jnp.zeros((Bp, L), jnp.int32).at[:B].set(indices.astype(jnp.int32))
    grid = (Bp // tb, Vp // vt)

    out_p = pl.pallas_call(
        functools.partial(_bag_mean_matmul_kernel, bag_len=L),
        out_shape=jax.ShapeDtypeStruct((Bp, Dp), jnp.float32),
        grid_spec=pltpu.PrefetchScalarGridSpec(
            num_scalar_prefetch=0,
            grid=grid,
            in_specs=[
                pl.BlockSpec((tb, L), lambda i, k: (i, 0)),
                pl.BlockSpec((vt, Dp), lambda i, k: (k, 0)),
            ],
            out_specs=pl.BlockSpec((tb, Dp), lambda i, k: (i, 0)),
        ),
        compiler_params=pltpu.CompilerParams(
            dimension_semantics=("parallel", "arbitrary"),
            vmem_limit_bytes=vmem_limit,
        ),
    )(idx_p, emb_p)
    return out_p[:B, :D]


# ----------------------------------------------------------------------------
# Large-vocab path: scalar-prefetch row gather (table stays in HBM, only the
# B*L referenced rows are DMA'd via a data-dependent BlockSpec index_map).
# ----------------------------------------------------------------------------
def _bag_mean_gather_kernel(idx_ref, row_ref, out_ref, *, bag_len):
    # idx_ref: (B, L) int32 in SMEM (scalar prefetch, consumed by index_maps)
    # row_ref: (1, 1, Dp) f32 -- table row idx[b, l], DMA'd by the BlockSpec
    # out_ref: (1, 1, Dp) f32 -- resident across the l grid axis
    del idx_ref
    l = pl.program_id(1)

    @pl.when(l == 0)
    def _():
        out_ref[...] = jnp.zeros_like(out_ref)

    out_ref[...] += row_ref[...]

    @pl.when(l == pl.num_programs(1) - 1)
    def _():
        out_ref[...] *= (1.0 / jnp.float32(bag_len))


def _bag_mean_gather(indices, emb_p, V, D, vmem_limit):
    B, L = indices.shape
    Vp, Dp = emb_p.shape
    # Clip keeps the data-dependent row DMA in bounds (PyTorch raises on
    # out-of-range indices; valid inputs are unaffected).
    idx_p = jnp.clip(indices.astype(jnp.int32), 0, V - 1)
    emb_3d = emb_p.reshape(Vp, 1, Dp)

    out = pl.pallas_call(
        functools.partial(_bag_mean_gather_kernel, bag_len=L),
        out_shape=jax.ShapeDtypeStruct((B, 1, Dp), jnp.float32),
        grid_spec=pltpu.PrefetchScalarGridSpec(
            num_scalar_prefetch=1,
            grid=(B, L),
            in_specs=[
                pl.BlockSpec((1, 1, Dp),
                             lambda b, l, idx_ref: (idx_ref[b, l], 0, 0)),
            ],
            out_specs=pl.BlockSpec((1, 1, Dp),
                                   lambda b, l, idx_ref: (b, 0, 0)),
        ),
        compiler_params=pltpu.CompilerParams(
            dimension_semantics=("parallel", "arbitrary"),
            vmem_limit_bytes=vmem_limit,
        ),
    )(idx_p, emb_3d)
    return out[:B, 0, :D]


# ----------------------------------------------------------------------------
# Factory: pad the table ONCE, pick kernel per call.
# ----------------------------------------------------------------------------
def make_embedding_bag_mean(emb_weight):
    """nn.EmbeddingBag(mode='mean') forward for 2-D index input."""
    V, D = emb_weight.shape
    Dp = _round_up(D, 128)                        # lane-dense output / table
    table_cap, vmem_limit = _vmem_budget_bytes()
    # Vocab tile: double-buffered table tile + worst-case (128, Vt) counts
    # must fit the per-generation budget.
    vt = max(8, (table_cap // (2 * Dp * 4 + 128 * 4)) // 8 * 8)
    vt = min(_round_up(V, 8), vt)
    Vp = _round_up(V, vt)

    # Pad once at init (zero rows in [V, Vp) never match an index in [0, V)).
    emb_p = jnp.zeros((Vp, Dp), jnp.float32).at[:V, :D].set(
        emb_weight.astype(jnp.float32))
    emb_p = jax.block_until_ready(emb_p)

    def apply(indices):
        B, L = indices.shape
        if V >= 8 * B * L:        # table much bigger than the gathered rows
            return _bag_mean_gather(indices, emb_p, V, D, vmem_limit)
        return _bag_mean_matmul(indices, emb_p, V, D, vt, vmem_limit)

    return apply


def embedding_bag_mean(indices, emb_weight):
    return make_embedding_bag_mean(emb_weight)(indices)


if __name__ == "__main__":
    key = jax.random.PRNGKey(0)
    k_w, k_idx = jax.random.split(key)

    V, D = 10, 10            # nn.EmbeddingBag(10, 10)
    B, L = 2, 8              # 2 bags of 8 indices each (2-D EmbeddingBag input)

    emb_weight = jax.random.normal(k_w, (V, D), dtype=jnp.float32)
    fwd = make_embedding_bag_mean(emb_weight)

    indices = jax.random.randint(k_idx, (B, L), 0, V, dtype=jnp.int32)
    out = jax.block_until_ready(fwd(indices))
    ref = jnp.mean(emb_weight[indices], axis=1)
    assert out.shape == (B, D)
    assert jnp.allclose(out, ref, atol=1e-5, rtol=1e-5)

    # Batch padding / multi-block (2-core) path, matmul kernel.
    idx2 = jax.random.randint(jax.random.PRNGKey(1), (20, L), 0, V,
                              dtype=jnp.int32)
    out2 = jax.block_until_ready(fwd(idx2))
    assert jnp.allclose(out2, jnp.mean(emb_weight[idx2], axis=1),
                        atol=1e-5, rtol=1e-5)

    # Long-bag path exercising the fori_loop counts accumulation.
    idx3 = jax.random.randint(jax.random.PRNGKey(2), (4, 32), 0, V,
                              dtype=jnp.int32)
    out3 = jax.block_until_ready(fwd(idx3))
    assert jnp.allclose(out3, jnp.mean(emb_weight[idx3], axis=1),
                        atol=1e-5, rtol=1e-5)

    # Large-vocab path exercising the scalar-prefetch row-gather kernel.
    V2, D2, B2, L2 = 512, 16, 4, 8
    w2 = jax.random.normal(jax.random.PRNGKey(3), (V2, D2), dtype=jnp.float32)
    fwd2 = make_embedding_bag_mean(w2)
    idx4 = jax.random.randint(jax.random.PRNGKey(4), (B2, L2), 0, V2,
                              dtype=jnp.int32)
    out4 = jax.block_until_ready(fwd2(idx4))
    assert jnp.allclose(out4, jnp.mean(w2[idx4], axis=1), atol=1e-5, rtol=1e-5)

    print("KERNEL_OK")
</pallas_src>

<mosaic_0001>
module attributes {stable_mosaic.version = 11 : i64} {
  func.func @_bag_mean_matmul_kernel(%arg0: i32, %arg1: i32, %arg2: memref<8x8xi32, #tpu.memory_space<vmem>>, %arg3: memref<16x128xf32, #tpu.memory_space<vmem>>, %arg4: memref<8x128xf32, #tpu.memory_space<vmem>>) attributes {dimension_semantics = [#tpu.dimension_semantics<parallel>, #tpu.dimension_semantics<arbitrary>], iteration_bounds = array<i64: 1, 1>, scalar_prefetch = 0 : i64, scratch_operands = 0 : i64, tpu.core_type = #tpu.core_type<tc>, window_params = [{transform_indices = @transform_0, window_bounds = array<i64: 8, 8>}, {transform_indices = @transform_1, window_bounds = array<i64: 16, 128>}, {transform_indices = @transform_2, window_bounds = array<i64: 8, 128>}]} {
    %c0_i32 = arith.constant 0 : i32
    %0 = arith.cmpi eq, %arg1, %c0_i32 : i32
    %1 = arith.extui %0 : i1 to i32
    %c0_i32_0 = arith.constant 0 : i32
    %2 = arith.cmpi ne, %1, %c0_i32_0 : i32
    scf.if %2 {
      %cst_11 = arith.constant 0.000000e+00 : f32
      %65 = vector.broadcast %cst_11 : f32 to vector<8x128xf32>
      %c0_12 = arith.constant 0 : index
      %c0_13 = arith.constant 0 : index
      %66 = vector.load %arg4[%c0_12, %c0_13] : memref<8x128xf32, #tpu.memory_space<vmem>>, vector<8x128xf32>
      tpu.vector_store %arg4[%c0_12, %c0_13], %65 {strides = array<i32>} : memref<8x128xf32, #tpu.memory_space<vmem>>, vector<8x128xf32>,
    } else {
    }
    %c0 = arith.constant 0 : index
    %c0_1 = arith.constant 0 : index
    %3 = vector.load %arg2[%c0, %c0_1] : memref<8x8xi32, #tpu.memory_space<vmem>>, vector<8x8xi32>
    %c16_i32 = arith.constant 16 : i32
    %4 = arith.muli %arg1, %c16_i32 : i32
    %5 = vector.broadcast %4 : i32 to vector<8x8xi32>
    %6 = arith.subi %3, %5 : vector<8x8xi32>
    %7 = tpu.iota {dimensions = array<i32: 1>} : vector<8x16xi32>
    %cst = arith.constant 0.000000e+00 : f32
    %8 = vector.broadcast %cst : f32 to vector<8x16xf32>
    %9 = vector.extract_strided_slice %6 {offsets = [0, 0], sizes = [8, 1], strides = [1, 1]} : vector<8x8xi32> to vector<8x1xi32>
    %10 = vector.broadcast %9 : vector<8x1xi32> to vector<8x16xi32>
    %11 = arith.cmpi eq, %10, %7 : vector<8x16xi32>
    %12 = arith.extui %11 : vector<8x16xi1> to vector<8x16xi32>
    %13 = arith.sitofp %12 : vector<8x16xi32> to vector<8x16xf32>
    %14 = arith.addf %8, %13 : vector<8x16xf32>
    %15 = vector.extract_strided_slice %6 {offsets = [0, 1], sizes = [8, 1], strides = [1, 1]} : vector<8x8xi32> to vector<8x1xi32>
    %16 = vector.broadcast %15 : vector<8x1xi32> to vector<8x16xi32>
    %17 = arith.cmpi eq, %16, %7 : vector<8x16xi32>
    %18 = arith.extui %17 : vector<8x16xi1> to vector<8x16xi32>
    %19 = arith.sitofp %18 : vector<8x16xi32> to vector<8x16xf32>
    %20 = arith.addf %14, %19 : vector<8x16xf32>
    %21 = vector.extract_strided_slice %6 {offsets = [0, 2], sizes = [8, 1], strides = [1, 1]} : vector<8x8xi32> to vector<8x1xi32>
    %22 = vector.broadcast %21 : vector<8x1xi32> to vector<8x16xi32>
    %23 = arith.cmpi eq, %22, %7 : vector<8x16xi32>
    %24 = arith.extui %23 : vector<8x16xi1> to vector<8x16xi32>
    %25 = arith.sitofp %24 : vector<8x16xi32> to vector<8x16xf32>
    %26 = arith.addf %20, %25 : vector<8x16xf32>
    %27 = vector.extract_strided_slice %6 {offsets = [0, 3], sizes = [8, 1], strides = [1, 1]} : vector<8x8xi32> to vector<8x1xi32>
    %28 = vector.broadcast %27 : vector<8x1xi32> to vector<8x16xi32>
    %29 = arith.cmpi eq, %28, %7 : vector<8x16xi32>
    %30 = arith.extui %29 : vector<8x16xi1> to vector<8x16xi32>
    %31 = arith.sitofp %30 : vector<8x16xi32> to vector<8x16xf32>
    %32 = arith.addf %26, %31 : vector<8x16xf32>
    %33 = vector.extract_strided_slice %6 {offsets = [0, 4], sizes = [8, 1], strides = [1, 1]} : vector<8x8xi32> to vector<8x1xi32>
    %34 = vector.broadcast %33 : vector<8x1xi32> to vector<8x16xi32>
    %35 = arith.cmpi eq, %34, %7 : vector<8x16xi32>
    %36 = arith.extui %35 : vector<8x16xi1> to vector<8x16xi32>
    %37 = arith.sitofp %36 : vector<8x16xi32> to vector<8x16xf32>
    %38 = arith.addf %32, %37 : vector<8x16xf32>
    %39 = vector.extract_strided_slice %6 {offsets = [0, 5], sizes = [8, 1], strides = [1, 1]} : vector<8x8xi32> to vector<8x1xi32>
    %40 = vector.broadcast %39 : vector<8x1xi32> to vector<8x16xi32>
    %41 = arith.cmpi eq, %40, %7 : vector<8x16xi32>
    %42 = arith.extui %41 : vector<8x16xi1> to vector<8x16xi32>
    %43 = arith.sitofp %42 : vector<8x16xi32> to vector<8x16xf32>
    %44 = arith.addf %38, %43 : vector<8x16xf32>
    %45 = vector.extract_strided_slice %6 {offsets = [0, 6], sizes = [8, 1], strides = [1, 1]} : vector<8x8xi32> to vector<8x1xi32>
    %46 = vector.broadcast %45 : vector<8x1xi32> to vector<8x16xi32>
    %47 = arith.cmpi eq, %46, %7 : vector<8x16xi32>
    %48 = arith.extui %47 : vector<8x16xi1> to vector<8x16xi32>
    %49 = arith.sitofp %48 : vector<8x16xi32> to vector<8x16xf32>
    %50 = arith.addf %44, %49 : vector<8x16xf32>
    %51 = vector.extract_strided_slice %6 {offsets = [0, 7], sizes = [8, 1], strides = [1, 1]} : vector<8x8xi32> to vector<8x1xi32>
    %52 = vector.broadcast %51 : vector<8x1xi32> to vector<8x16xi32>
    %53 = arith.cmpi eq, %52, %7 : vector<8x16xi32>
    %54 = arith.extui %53 : vector<8x16xi1> to vector<8x16xi32>
    %55 = arith.sitofp %54 : vector<8x16xi32> to vector<8x16xf32>
    %56 = arith.addf %50, %55 : vector<8x16xf32>
    %c0_2 = arith.constant 0 : index
    %c0_3 = arith.constant 0 : index
    %57 = vector.load %arg4[%c0_2, %c0_3] : memref<8x128xf32, #tpu.memory_space<vmem>>, vector<8x128xf32>
    %c0_4 = arith.constant 0 : index
    %c0_5 = arith.constant 0 : index
    %58 = vector.load %arg3[%c0_4, %c0_5] : memref<16x128xf32, #tpu.memory_space<vmem>>, vector<16x128xf32>
    %cst_6 = arith.constant dense<0.000000e+00> : vector<8x128xf32>
    %59 = tpu.matmul %56, %58, %cst_6 {dimension_numbers = #tpu.dot_dimension_numbers<[1], [0], [0], [1], [0, 0, 1, 1], [], []>} : vector<8x16xf32>, vector<16x128xf32>, vector<8x128xf32> -> vector<8x128xf32>
    %60 = arith.addf %57, %59 : vector<8x128xf32>
    %c0_7 = arith.constant 0 : index
    %c0_8 = arith.constant 0 : index
    %61 = vector.load %arg4[%c0_7, %c0_8] : memref<8x128xf32, #tpu.memory_space<vmem>>, vector<8x128xf32>
    tpu.vector_store %arg4[%c0_7, %c0_8], %60 {strides = array<i32>} : memref<8x128xf32, #tpu.memory_space<vmem>>, vector<8x128xf32>,
    %c0_i32_9 = arith.constant 0 : i32
    %62 = arith.cmpi eq, %arg1, %c0_i32_9 : i32
    %63 = arith.extui %62 : i1 to i32
    %c0_i32_10 = arith.constant 0 : i32
    %64 = arith.cmpi ne, %63, %c0_i32_10 : i32
    scf.if %64 {
      %c0_11 = arith.constant 0 : index
      %c0_12 = arith.constant 0 : index
      %65 = vector.load %arg4[%c0_11, %c0_12] : memref<8x128xf32, #tpu.memory_space<vmem>>, vector<8x128xf32>
      %cst_13 = arith.constant 1.000000e+00 : f32
      %cst_14 = arith.constant 8.000000e+00 : f32
      %66 = arith.divf %cst_13, %cst_14 : f32
      %67 = vector.broadcast %66 : f32 to vector<8x128xf32>
      %68 = arith.mulf %65, %67 : vector<8x128xf32>
      %c0_15 = arith.constant 0 : index
      %c0_16 = arith.constant 0 : index
      %69 = vector.load %arg4[%c0_15, %c0_16] : memref<8x128xf32, #tpu.memory_space<vmem>>, vector<8x128xf32>
      tpu.vector_store %arg4[%c0_15, %c0_16], %68 {strides = array<i32>} : memref<8x128xf32, #tpu.memory_space<vmem>>, vector<8x128xf32>,
    } else {
    }
    return
  }
  func.func @transform_0(%arg0: i32, %arg1: i32) -> (i32, i32) {
    %c0_i32 = arith.constant 0 : i32
    %c0_i32_0 = arith.constant 0 : i32
    return %arg0, %c0_i32 : i32, i32
  }
  func.func @transform_1(%arg0: i32, %arg1: i32) -> (i32, i32) {
    %c0_i32 = arith.constant 0 : i32
    %c0_i32_0 = arith.constant 0 : i32
    return %arg1, %c0_i32 : i32, i32
  }
  func.func @transform_2(%arg0: i32, %arg1: i32) -> (i32, i32) {
    %c0_i32 = arith.constant 0 : i32
    %c0_i32_0 = arith.constant 0 : i32
    return %arg0, %c0_i32 : i32, i32
  }
}

</mosaic_0001>

<llo_original>
// kernel: tpu_custom_call.1
$region0: #{tpu_custom_call.1}
  #allocation0 [shape = 'u32[]', space=smem, size = 0x4, offset = 0x4, fixed_abs, tag = 'smem constant byte address 0x4 - core index']
  #allocation1 [shape = 'u32[144,128]{1,0:T(1,128)}', space=vmem, size = 0x12000, scoped, tag = 'internal scratch']
  %s0 = inlined_call_operand.hbm [shape: s32[8,8], index: 0, kind: input, shape index: {}]
  %s1 = inlined_call_operand.hbm [shape: f32[16,128], index: 1, kind: input, shape index: {}]
  %s2 = inlined_call_operand.hbm [shape: f32[8,128], index: 2, kind: output, shape index: {}]
  %s3 = sld [smem:[#allocation0]]
  $region34: #{tpu_custom_call.1} parent=0
    _
  %s5 = ssub.s32 1, %s3
  %s6 = scalar_select 0, %s5, %s3
  $region1: #{tpu_custom_call.1} parent=0
    #allocation2 [shape = 'u8[4096]{0}', space=vmem, size = 0x1000, scoped, tag = 'input window, operand 0, single buffered']
    #allocation3 [shape = 's32[1]{0}', space=sflag, size = 0x4, scoped, tag = 'scoped memory for tpu_custom_call.1']
    #allocation4 [shape = 's32[1]{0}', space=sflag, size = 0x4, scoped, tag = 'scoped memory for tpu_custom_call.1']
    #allocation5 [shape = 'u8[8192]{0}', space=vmem, size = 0x2000, scoped, tag = 'input window, operand 1, single buffered']
    #allocation6 [shape = 's32[1]{0}', space=sflag, size = 0x4, scoped, tag = 'scoped memory for tpu_custom_call.1']
    #allocation7 [shape = 'u8[4096]{0}', space=vmem, size = 0x1000, scoped, tag = 'output window, operand 0, single buffered']
    %7 = vsyncpa [#allocation3], 0
    %8 = vsyncpa [#allocation6], 0
    %9 = vsyncpa [#allocation4], 0
    // Predicated region
    $region2: #{tpu_custom_call.1} parent=1 // pred_check
      _
    $region3: #{tpu_custom_call.1} parent=1 // pred_check_branch
      %11 = sbr.rel (0) target = $region5
    $region4: #{tpu_custom_call.1} parent=1 // pred_region
      %s13 = ssub.s32 128, 128
      %14 = vsyncadd [#allocation3], %s13
      %s16 = sshll.u32 [#allocation2], 4
      %s17 = int_to_ptr.vmem [resolvable:$true] %s16
      %19 = dma.hbm_to_vmem [thread:$0]  %s0, 128, %s17, [#allocation3]
    $region5: #{tpu_custom_call.1} parent=1 // pred_fallthru
      _
    // Predicated region
    $region6: #{tpu_custom_call.1} parent=1 // pred_check
      _
    $region7: #{tpu_custom_call.1} parent=1 // pred_check_branch
      %21 = sbr.rel (0) target = $region9
    $region8: #{tpu_custom_call.1} parent=1 // pred_region
      %s23 = ssub.s32 256, 256
      %24 = vsyncadd [#allocation6], %s23
      %s25 = sshll.u32 [#allocation5], 4
      %s26 = int_to_ptr.vmem [resolvable:$true] %s25
      %31 = dma.hbm_to_vmem [thread:$0]  %s1, 256, %s26, [#allocation6], 128, 128, 8
    $region9: #{tpu_custom_call.1} parent=1 // pred_fallthru
      _
    // Predicated region
    $region10: #{tpu_custom_call.1} parent=1 // pred_check
      _
    $region11: #{tpu_custom_call.1} parent=1 // pred_check_branch
      %33 = sbr.rel (0) target = $region13
    $region12: #{tpu_custom_call.1} parent=1 // pred_region
      %34 = dma.done [#allocation3], 128
    $region13: #{tpu_custom_call.1} parent=1 // pred_fallthru
      _
    // Predicated region
    $region14: #{tpu_custom_call.1} parent=1 // pred_check
      _
    $region15: #{tpu_custom_call.1} parent=1 // pred_check_branch
      %36 = sbr.rel (0) target = $region17
    $region16: #{tpu_custom_call.1} parent=1 // pred_region
      %37 = dma.done [#allocation6], 256
    $region17: #{tpu_custom_call.1} parent=1 // pred_fallthru
      _
    %p38 = scmp.eq.s32.totalorder 0, 0
    // Predicated region
    $region18: #{tpu_custom_call.1} parent=1 // pred_check
      %p39 = pneg %p38
    $region19: #{tpu_custom_call.1} parent=1 // pred_check_branch
      %41 = sbr.rel (%p39) target = $region21
    $region20: #{tpu_custom_call.1} parent=1 // pred_region
      %42 = vst [vmem:[#allocation7] sm:$0xff] 0.0
    $region21: #{tpu_custom_call.1} parent=1 // pred_fallthru
      _
    %v43 = vld [vmem:[#allocation2] sm:$0xff]
    %s44 = smul.u32 0, 16
    %v45 = vstv %s44
    %v46 = vsub.s32 %v43, %v45
    %v47 = vlaneseq
    %v48 = vand.u32 %v47, 127
    %49 = vset.pattern.permute.xlu0 0
    %50 = vperm.xlu0 %49, %v46
    %v51 = vpop.permute.xlu0 %50
    %vm52 = vcmp.eq.s32.totalorder %v51, %v48
    %v53 = vsel %vm52, 1, 0
    %v54 = vcvt.s32.f32 %v53
    %v55 = vadd.f32 %v54, 0.0
    %56 = vset.pattern.permute.xlu0 1
    %57 = vperm.xlu0 %56, %v46
    %v58 = vpop.permute.xlu0 %57
    %vm59 = vcmp.eq.s32.totalorder %v58, %v48
    %v60 = vsel %vm59, 1, 0
    %v61 = vcvt.s32.f32 %v60
    %v62 = vadd.f32 %v55, %v61
    %63 = vset.pattern.permute.xlu0 2
    %64 = vperm.xlu0 %63, %v46
    %v65 = vpop.permute.xlu0 %64
    %vm66 = vcmp.eq.s32.totalorder %v65, %v48
    %v67 = vsel %vm66, 1, 0
    %v68 = vcvt.s32.f32 %v67
    %v69 = vadd.f32 %v62, %v68
    %70 = vset.pattern.permute.xlu0 3
    %71 = vperm.xlu0 %70, %v46
    %v72 = vpop.permute.xlu0 %71
    %vm73 = vcmp.eq.s32.totalorder %v72, %v48
    %v74 = vsel %vm73, 1, 0
    %v75 = vcvt.s32.f32 %v74
    %v76 = vadd.f32 %v69, %v75
    %77 = vset.pattern.permute.xlu0 4
    %78 = vperm.xlu0 %77, %v46
    %v79 = vpop.permute.xlu0 %78
    %vm80 = vcmp.eq.s32.totalorder %v79, %v48
    %v81 = vsel %vm80, 1, 0
    %v82 = vcvt.s32.f32 %v81
    %v83 = vadd.f32 %v76, %v82
    %84 = vset.pattern.permute.xlu0 5
    %85 = vperm.xlu0 %84, %v46
    %v86 = vpop.permute.xlu0 %85
    %vm87 = vcmp.eq.s32.totalorder %v86, %v48
    %v88 = vsel %vm87, 1, 0
    %v89 = vcvt.s32.f32 %v88
    %v90 = vadd.f32 %v83, %v89
    %91 = vset.pattern.permute.xlu0 6
    %92 = vperm.xlu0 %91, %v46
    %v93 = vpop.permute.xlu0 %92
    %vm94 = vcmp.eq.s32.totalorder %v93, %v48
    %v95 = vsel %vm94, 1, 0
    %v96 = vcvt.s32.f32 %v95
    %v97 = vadd.f32 %v90, %v96
    %98 = vset.pattern.permute.xlu0 7
    %99 = vperm.xlu0 %98, %v46
    %v100 = vpop.permute.xlu0 %99
    %vm101 = vcmp.eq.s32.totalorder %v100, %v48
    %v102 = vsel %vm101, 1, 0
    %v103 = vcvt.s32.f32 %v102
    %v104 = vadd.f32 %v97, %v103
    %v105 = vld [vmem:[#allocation7] sm:$0xff]
    %v106 = vld [vmem:[#allocation5] sm:$0xff]
    %v107 = vld [vmem:[#allocation5 + $0x8] sm:$0xff]
    %vm108 = vcmask 130048
    %v110 = vsel %vm108, %v104, 0
    %112 = vmatprep.subr.mxu0 0.0
    %113 = vmatpush1.msra.mxu0 %v106
    %114 = vmatprep.subr.mxu0 0.0
    %115 = vmatpush1.msra.mxu0 %v107
    %116 = vmatprep.subr.mxu0 0.0
    %117 = vmatpush1.msra.mxu0 0.0
    %118 = vmatprep.subr.mxu0 0.0
    %119 = vmatpush1.msra.mxu0 0.0
    %120 = vmatprep.subr.mxu0 0.0
    %121 = vmatpush1.msra.mxu0 0.0
    %122 = vmatprep.subr.mxu0 0.0
    %123 = vmatpush1.msra.mxu0 0.0
    %124 = vmatprep.subr.mxu0 0.0
    %125 = vmatpush1.msra.mxu0 0.0
    %126 = vmatprep.subr.mxu0 0.0
    %127 = vmatpush1.msra.mxu0 0.0
    %128 = vmatprep.subr.mxu0 0.0
    %129 = vmatpush1.msra.mxu0 0.0
    %130 = vmatprep.subr.mxu0 0.0
    %131 = vmatpush1.msra.mxu0 0.0
    %132 = vmatprep.subr.mxu0 0.0
    %133 = vmatpush1.msra.mxu0 0.0
    %134 = vmatprep.subr.mxu0 0.0
    %135 = vmatpush1.msra.mxu0 0.0
    %136 = vmatprep.subr.mxu0 0.0
    %137 = vmatpush1.msra.mxu0 0.0
    %138 = vmatprep.subr.mxu0 0.0
    %139 = vmatpush1.msra.mxu0 0.0
    %140 = vmatprep.subr.mxu0 0.0
    %141 = vmatpush1.msra.mxu0 0.0
    %142 = vmatprep.subr.mxu0 0.0
    %143 = vmatpush1.msra.mxu0 0.0
    %144 = vmatprep.subr.mxu0 0.0
    %145 = vmatpush1.msra.mxu0 0.0
    %146 = vmatprep.subr.mxu0 0.0
    %147 = vmatpush1.msra.mxu0 0.0
    %148 = vmatprep.subr.mxu0 0.0
    %149 = vmatpush1.msra.mxu0 0.0
    %150 = vmatprep.subr.mxu0 0.0
    %151 = vmatpush1.msra.mxu0 0.0
    %152 = vmatprep.subr.mxu0 0.0
    %153 = vmatpush1.msra.mxu0 0.0
    %154 = vmatprep.subr.mxu0 0.0
    %155 = vmatpush1.msra.mxu0 0.0
    %156 = vmatprep.subr.mxu0 0.0
    %157 = vmatpush1.msra.mxu0 0.0
    %158 = vmatprep.subr.mxu0 0.0
    %159 = vmatpush1.msra.mxu0 0.0
    %160 = vmatprep.subr.mxu0 0.0
    %161 = vmatpush1.msra.mxu0 0.0
    %162 = vmatprep.subr.mxu0 0.0
    %163 = vmatpush1.msra.mxu0 0.0
    %164 = vmatprep.subr.mxu0 0.0
    %165 = vmatpush1.msra.mxu0 0.0
    %166 = vmatprep.subr.mxu0 0.0
    %167 = vmatpush1.msra.mxu0 0.0
    %168 = vmatprep.subr.mxu0 0.0
    %169 = vmatpush1.msra.mxu0 0.0
    %170 = vmatprep.subr.mxu0 0.0
    %171 = vmatpush1.msra.mxu0 0.0
    %172 = vmatprep.subr.mxu0 0.0
    %173 = vmatpush1.msra.mxu0 0.0
    %174 = vmatprep.subr.mxu0 0.0
    %175 = vmatpush1.msra.mxu0 0.0
    %176 = vmatprep.mubr.f32.mxu0 0.0
    %177 = vmatmul.mubr.f32.gmra.mrb[0].mxu0 %v110
    %v178 = vpop.f32.mrb[0].mxu0
    %v179 = vadd.f32 0.0, %v178
    %v180 = vpop.f32.mrb[0].mxu0
    %181 = vdwg.mxu0
    %v182 = vadd.f32 %v105, %v179
    %183 = vst [vmem:[#allocation7] sm:$0xff] %v182
    // Predicated region
    $region22: #{tpu_custom_call.1} parent=1 // pred_check
      %p184 = pneg %p38
    $region23: #{tpu_custom_call.1} parent=1 // pred_check_branch
      %186 = sbr.rel (%p184) target = $region25
    $region24: #{tpu_custom_call.1} parent=1 // pred_region
      %v187 = vld [vmem:[#allocation7] sm:$0xff]
      %v188 = vmul.f32 %v187, 0.125
      %189 = vst [vmem:[#allocation7] sm:$0xff] %v188
    $region25: #{tpu_custom_call.1} parent=1 // pred_fallthru
      _
    // Predicated region
    $region26: #{tpu_custom_call.1} parent=1 // pred_check
      _
    $region27: #{tpu_custom_call.1} parent=1 // pred_check_branch
      %191 = sbr.rel (0) target = $region29
    $region28: #{tpu_custom_call.1} parent=1 // pred_region
      %s193 = ssub.s32 128, 128
      %194 = vsyncadd [#allocation4], %s193
      %s196 = sshll.u32 [#allocation7], 4
      %s197 = int_to_ptr.vmem [resolvable:$true] %s196
      %199 = dma.vmem_to_hbm [thread:$0]  %s197, 128, %s2, [#allocation4]
    $region29: #{tpu_custom_call.1} parent=1 // pred_fallthru
      _
    // Predicated region
    $region30: #{tpu_custom_call.1} parent=1 // pred_check
      _
    $region31: #{tpu_custom_call.1} parent=1 // pred_check_branch
      %201 = sbr.rel (0) target = $region33
    $region32: #{tpu_custom_call.1} parent=1 // pred_region
      %202 = dma.done [#allocation4], 128
    $region33: #{tpu_custom_call.1} parent=1 // pred_fallthru
      _
    %203 = vsyncpa [#allocation3], 1
    %204 = vsyncpa [#allocation6], 1
    %205 = vsyncpa [#allocation4], 1

</llo_original>
